<compile_context>
chip_gen: v5e
topology: v5e:2x2
jax: 0.10.0
libtpu: 0.0.40
codegen_flags: <defaults>
</compile_context>

<pallas_src>
import jax
import jax.numpy as jnp
from jax.experimental import pallas as pl
from jax.experimental.pallas import tpu as pltpu

LANES = 128          # lane width: 64 batch rows per lane-row (2 features each)
SUBLANES = 8


def _affine_kernel(x_ref, coef_ref, o_ref):
    """y (interleaved) = x*w_same + right(x)*w_right + left(x)*w_left + bias.

    x_ref/o_ref: [block_rows, 128] f32, lanes alternate (x0, x1, x0, x1, ...).
    coef_ref:    [4, 128] f32 rows = (w_same, w_right, w_left, bias).
    """
    x = x_ref[...]                                        # [BR, 128]
    # Adjacent-lane neighbours via XLU lane rotation (free slot vs VPU/ld-st).
    # pltpu.roll follows jnp.roll semantics: roll(x, s)[i] = x[(i - s) % 128].
    nbr_right = pltpu.roll(x, shift=LANES - 1, axis=1)    # lane i <- lane i+1
    nbr_left = pltpu.roll(x, shift=1, axis=1)             # lane i <- lane i-1
    # Wrap-around lanes (0 and 127) pick up garbage, but the corresponding
    # coefficient lanes are exactly zero, so the result is unaffected.
    o_ref[...] = (x * coef_ref[0:1, :]
                  + nbr_right * coef_ref[1:2, :]
                  + nbr_left * coef_ref[2:3, :]
                  + coef_ref[3:4, :])


def _fold_params(params):
    """Collapse the affine network into (W_fused [2,2], b_fused [2])."""
    w_bef, b_bef, w0, b0, w1, b1, w_aft, b_aft = params
    w_mid = w0 + w1                     # layers[0] and layers[1] share the input
    b_mid = b0 + b1
    w_fused = w_bef @ w_mid @ w_aft                        # [2, 2]
    b_fused = (b_bef @ w_mid + b_mid) @ w_aft + b_aft      # [1, 2]
    return w_fused, b_fused.reshape(2)


def _lane_coefficients(w_fused, b_fused):
    """Lane-alternating coefficient vectors for the interleaved layout."""
    lane = jnp.arange(LANES)
    even = (lane % 2) == 0
    # even lanes hold x0 / produce y0, odd lanes hold x1 / produce y1.
    w_same = jnp.where(even, w_fused[0, 0], w_fused[1, 1])
    w_right = jnp.where(even, w_fused[1, 0], 0.0)   # * x from lane i+1 (x1)
    w_left = jnp.where(even, 0.0, w_fused[0, 1])    # * x from lane i-1 (x0)
    bias = jnp.where(even, b_fused[0], b_fused[1])
    return jnp.stack([w_same, w_right, w_left, bias]).astype(jnp.float32)


def _round_up(n, m):
    return ((n + m - 1) // m) * m


def custom_model_forward(x, params, *, target_block_rows=8192):
    """Run the fused network. x: [batch, 2] float32 -> [batch, 2] float32.

    target_block_rows=8192 -> 4 MiB per block (in + out double-buffered =
    16 MiB VMEM), good for v5e/v6e/v7x defaults.
    """
    batch = x.shape[0]
    w_fused, b_fused = _fold_params(params)
    coef = _lane_coefficients(w_fused, b_fused)            # [4, 128]

    # How many 128-lane rows the interleaved batch needs.
    rows_needed = pl.cdiv(batch * 2, LANES)
    rows8 = max(_round_up(rows_needed, SUBLANES), SUBLANES)

    if rows8 <= target_block_rows:
        block_rows, num_blocks = rows8, 1
    else:
        num_blocks = pl.cdiv(rows8, target_block_rows)
        if num_blocks % 2:
            num_blocks += 1          # even grid: both v7x TensorCores get work
        block_rows = _round_up(pl.cdiv(rows8, num_blocks), SUBLANES)
    total_rows = block_rows * num_blocks
    padded_elems = total_rows * LANES

    # Free contiguous reshape; pad (single flat copy) only if actually ragged.
    x_flat = x.reshape(-1)
    if padded_elems != batch * 2:
        x_flat = jnp.pad(x_flat, (0, padded_elems - batch * 2))
    x_lanes = x_flat.reshape(total_rows, LANES)

    y_lanes = pl.pallas_call(
        _affine_kernel,
        out_shape=jax.ShapeDtypeStruct((total_rows, LANES), jnp.float32),
        grid=(num_blocks,),
        in_specs=[
            pl.BlockSpec((block_rows, LANES), lambda i: (i, 0)),   # x slab
            pl.BlockSpec((4, LANES), lambda i: (0, 0)),            # coefficients
        ],
        out_specs=pl.BlockSpec((block_rows, LANES), lambda i: (i, 0)),
        compiler_params=pltpu.CompilerParams(
            dimension_semantics=("parallel",)),
    )(x_lanes, coef)

    y = y_lanes.reshape(-1, 2)                              # free reshape
    return y if y.shape[0] == batch else y[:batch]


def init_params(key):
    """Deterministic init mirroring torch.nn.Linear shapes.

    torch.nn.Linear(in, out) has weight [out, in] and bias [out]; we generate
    in that convention then transpose weights to [in, out] for x @ W.
    """
    def linear(key, in_f, out_f):
        kw, kb = jax.random.split(key)
        bound = 1.0 / jnp.sqrt(in_f)
        w = jax.random.uniform(kw, (out_f, in_f), jnp.float32, -bound, bound)
        b = jax.random.uniform(kb, (out_f,), jnp.float32, -bound, bound)
        return w.T, b.reshape(1, out_f)      # [in, out], [1, out]

    k_bef, k0, k1, k_aft = jax.random.split(key, 4)
    w_bef, b_bef = linear(k_bef, 2, 4)
    w0, b0 = linear(k0, 4, 4)
    w1, b1 = linear(k1, 4, 4)
    w_aft, b_aft = linear(k_aft, 4, 2)
    return (w_bef, b_bef, w0, b0, w1, b1, w_aft, b_aft)


def reference_forward(x, params):
    """Pure-JAX layer-by-layer reference (matches the torch module exactly)."""
    w_bef, b_bef, w0, b0, w1, b1, w_aft, b_aft = params
    h = x @ w_bef + b_bef
    h = (h @ w0 + b0) + (h @ w1 + b1)
    return h @ w_aft + b_aft


if __name__ == "__main__":
    key = jax.random.PRNGKey(0)
    k_params, k_x = jax.random.split(key)
    params = init_params(k_params)

    # 1) Module's natural small shape: [batch=8, in_features=2] (single block).
    x = jax.random.normal(k_x, (8, 2), jnp.float32)
    out = jax.block_until_ready(custom_model_forward(x, params))
    ref = reference_forward(x, params)
    assert out.shape == (8, 2)
    assert jnp.allclose(out, ref, atol=1e-5, rtol=1e-5), "mismatch (small)"

    # 2) Ragged batch (pad + prefix-slice path), still one block.
    x_mid = jax.random.normal(jax.random.PRNGKey(1), (1000, 2), jnp.float32)
    out_mid = jax.block_until_ready(custom_model_forward(x_mid, params))
    ref_mid = reference_forward(x_mid, params)
    assert out_mid.shape == (1000, 2)
    assert jnp.allclose(out_mid, ref_mid, atol=1e-5, rtol=1e-5), "mismatch (mid)"

    # 3) Multi-block grid (small block override to exercise the pipelined grid
    #    and the even-grid heuristic without a huge batch).
    x_big = jax.random.normal(jax.random.PRNGKey(2), (2000, 2), jnp.float32)
    out_big = jax.block_until_ready(
        custom_model_forward(x_big, params, target_block_rows=8))
    ref_big = reference_forward(x_big, params)
    assert out_big.shape == (2000, 2)
    assert jnp.allclose(out_big, ref_big, atol=1e-5, rtol=1e-5), "mismatch (big)"

    print("KERNEL_OK")
</pallas_src>

<mosaic_0001>
module attributes {stable_mosaic.version = 11 : i64} {
  func.func @_affine_kernel(%arg0: i32, %arg1: memref<8x128xf32, #tpu.memory_space<vmem>>, %arg2: memref<4x128xf32, #tpu.memory_space<vmem>>, %arg3: memref<8x128xf32, #tpu.memory_space<vmem>>) attributes {dimension_semantics = [#tpu.dimension_semantics<parallel>], iteration_bounds = array<i64: 1>, scalar_prefetch = 0 : i64, scratch_operands = 0 : i64, tpu.core_type = #tpu.core_type<tc>, window_params = [{transform_indices = @transform_0, window_bounds = array<i64: 8, 128>}, {pipeline_mode = #tpu.pipeline_mode<synchronous>, transform_indices = @transform_1, window_bounds = array<i64: 4, 128>}, {transform_indices = @transform_2, window_bounds = array<i64: 8, 128>}]} {
    %c0 = arith.constant 0 : index
    %c0_0 = arith.constant 0 : index
    %0 = vector.load %arg1[%c0, %c0_0] : memref<8x128xf32, #tpu.memory_space<vmem>>, vector<8x128xf32>
    %c127_i32 = arith.constant 127 : i32
    %1 = tpu.dynamic_rotate %0 by %c127_i32 dim 1 : vector<8x128xf32>, i32 -> vector<8x128xf32>
    %c1_i32 = arith.constant 1 : i32
    %2 = tpu.dynamic_rotate %0 by %c1_i32 dim 1 : vector<8x128xf32>, i32 -> vector<8x128xf32>
    %c0_1 = arith.constant 0 : index
    %c0_2 = arith.constant 0 : index
    %3 = vector.load %arg2[%c0_1, %c0_2] : memref<4x128xf32, #tpu.memory_space<vmem>>, vector<1x128xf32>
    %4 = vector.broadcast %3 : vector<1x128xf32> to vector<8x128xf32>
    %5 = arith.mulf %0, %4 : vector<8x128xf32>
    %c1 = arith.constant 1 : index
    %c0_3 = arith.constant 0 : index
    %6 = vector.load %arg2[%c1, %c0_3] : memref<4x128xf32, #tpu.memory_space<vmem>>, vector<1x128xf32>
    %7 = vector.broadcast %6 : vector<1x128xf32> to vector<8x128xf32>
    %8 = arith.mulf %1, %7 : vector<8x128xf32>
    %9 = arith.addf %5, %8 : vector<8x128xf32>
    %c2 = arith.constant 2 : index
    %c0_4 = arith.constant 0 : index
    %10 = vector.load %arg2[%c2, %c0_4] : memref<4x128xf32, #tpu.memory_space<vmem>>, vector<1x128xf32>
    %11 = vector.broadcast %10 : vector<1x128xf32> to vector<8x128xf32>
    %12 = arith.mulf %2, %11 : vector<8x128xf32>
    %13 = arith.addf %9, %12 : vector<8x128xf32>
    %c3 = arith.constant 3 : index
    %c0_5 = arith.constant 0 : index
    %14 = vector.load %arg2[%c3, %c0_5] : memref<4x128xf32, #tpu.memory_space<vmem>>, vector<1x128xf32>
    %15 = vector.broadcast %14 : vector<1x128xf32> to vector<8x128xf32>
    %16 = arith.addf %13, %15 : vector<8x128xf32>
    %c0_6 = arith.constant 0 : index
    %c0_7 = arith.constant 0 : index
    %17 = vector.load %arg3[%c0_6, %c0_7] : memref<8x128xf32, #tpu.memory_space<vmem>>, vector<8x128xf32>
    tpu.vector_store %arg3[%c0_6, %c0_7], %16 {strides = array<i32>} : memref<8x128xf32, #tpu.memory_space<vmem>>, vector<8x128xf32>,
    return
  }
  func.func @transform_0(%arg0: i32) -> (i32, i32) {
    %c0_i32 = arith.constant 0 : i32
    %c0_i32_0 = arith.constant 0 : i32
    return %arg0, %c0_i32 : i32, i32
  }
  func.func @transform_1(%arg0: i32) -> (i32, i32) {
    %c0_i32 = arith.constant 0 : i32
    %c0_i32_0 = arith.constant 0 : i32
    %c0_i32_1 = arith.constant 0 : i32
    return %c0_i32, %c0_i32_0 : i32, i32
  }
  func.func @transform_2(%arg0: i32) -> (i32, i32) {
    %c0_i32 = arith.constant 0 : i32
    %c0_i32_0 = arith.constant 0 : i32
    return %arg0, %c0_i32 : i32, i32
  }
}

</mosaic_0001>

<llo_original>
// kernel: tpu_custom_call.1
$region0: #{tpu_custom_call.1}
  #allocation0 [shape = 'u32[]', space=smem, size = 0x4, offset = 0x4, fixed_abs, tag = 'smem constant byte address 0x4 - core index']
  #allocation1 [shape = 'u32[72,128]{1,0:T(1,128)}', space=vmem, size = 0x9000, scoped, tag = 'internal scratch']
  %s0 = inlined_call_operand.hbm [shape: f32[8,128], index: 0, kind: input, shape index: {}]
  %s1 = inlined_call_operand.hbm [shape: f32[4,128], index: 1, kind: input, shape index: {}]
  %s2 = inlined_call_operand.hbm [shape: f32[8,128], index: 2, kind: output, shape index: {}]
  %s3 = sld [smem:[#allocation0]]
  $region26: #{tpu_custom_call.1} parent=0
    _
  %s5 = ssub.s32 1, %s3
  %s6 = scalar_select 0, %s5, %s3
  $region1: #{tpu_custom_call.1} parent=0
    #allocation2 [shape = 'u8[4096]{0}', space=vmem, size = 0x1000, scoped, tag = 'input window, operand 0, single buffered']
    #allocation3 [shape = 's32[1]{0}', space=sflag, size = 0x4, scoped, tag = 'scoped memory for tpu_custom_call.1']
    #allocation4 [shape = 's32[1]{0}', space=sflag, size = 0x4, scoped, tag = 'scoped memory for tpu_custom_call.1']
    #allocation5 [shape = 'u8[2048]{0}', space=vmem, size = 0x800, scoped, tag = 'input window, operand 1, single buffered']
    #allocation6 [shape = 's32[1]{0}', space=sflag, size = 0x4, scoped, tag = 'scoped memory for tpu_custom_call.1']
    #allocation7 [shape = 'u8[4096]{0}', space=vmem, size = 0x1000, scoped, tag = 'output window, operand 0, single buffered']
    %7 = vsyncpa [#allocation3], 0
    %8 = vsyncpa [#allocation6], 0
    %9 = vsyncpa [#allocation4], 0
    // Predicated region
    $region2: #{tpu_custom_call.1} parent=1 // pred_check
      _
    $region3: #{tpu_custom_call.1} parent=1 // pred_check_branch
      %11 = sbr.rel (0) target = $region5
    $region4: #{tpu_custom_call.1} parent=1 // pred_region
      %13 = vsyncadd [#allocation3], 0
      %s15 = sshll.u32 %s0, 4
      %s16 = int_to_ptr.hbm [resolvable:$true] %s15
      %s17 = sshll.u32 [#allocation2], 4
      %s18 = int_to_ptr.vmem [resolvable:$true] %s17
      %20 = dma.hbm_to_vmem [thread:$0]  %s16, 128, %s18, [#allocation3]
    $region5: #{tpu_custom_call.1} parent=1 // pred_fallthru
      _
    // Predicated region
    $region6: #{tpu_custom_call.1} parent=1 // pred_check
      _
    $region7: #{tpu_custom_call.1} parent=1 // pred_check_branch
      %22 = sbr.rel (0) target = $region9
    $region8: #{tpu_custom_call.1} parent=1 // pred_region
      %24 = vsyncadd [#allocation6], 0
      %s26 = sshll.u32 %s1, 4
      %s27 = int_to_ptr.hbm [resolvable:$true] %s26
      %s28 = sshll.u32 [#allocation5], 4
      %s29 = int_to_ptr.vmem [resolvable:$true] %s28
      %31 = dma.hbm_to_vmem [thread:$0]  %s27, 64, %s29, [#allocation6]
    $region9: #{tpu_custom_call.1} parent=1 // pred_fallthru
      _
    // Predicated region
    $region10: #{tpu_custom_call.1} parent=1 // pred_check
      _
    $region11: #{tpu_custom_call.1} parent=1 // pred_check_branch
      %33 = sbr.rel (0) target = $region13
    $region12: #{tpu_custom_call.1} parent=1 // pred_region
      %35 = dma.done [#allocation3], 128
    $region13: #{tpu_custom_call.1} parent=1 // pred_fallthru
      _
    // Predicated region
    $region14: #{tpu_custom_call.1} parent=1 // pred_check
      _
    $region15: #{tpu_custom_call.1} parent=1 // pred_check_branch
      %37 = sbr.rel (0) target = $region17
    $region16: #{tpu_custom_call.1} parent=1 // pred_region
      %39 = dma.done [#allocation6], 64
    $region17: #{tpu_custom_call.1} parent=1 // pred_fallthru
      _
    %v40 = vld [vmem:[#allocation2] sm:$0xff]
    %41 = vrot.lane.b32.xlu0 %v40, 127
    %v42 = vpop.permute.xlu0 %41
    %43 = vrot.lane.b32.xlu0 %v40, 1
    %v44 = vpop.permute.xlu0 %43
    %v45 = vld [vmem:[#allocation5] sm:$0x1]
    %v46 = vperm.slane %v45, 0
    %v47 = vmul.f32 %v40, %v46
    %v48 = vld [vmem:[#allocation5 + $0x1] sm:$0x1]
    %v49 = vperm.slane %v48, 0
    %v50 = vmul.f32 %v42, %v49
    %v51 = vadd.f32 %v47, %v50
    %v52 = vld [vmem:[#allocation5 + $0x2] sm:$0x1]
    %v53 = vperm.slane %v52, 0
    %v54 = vmul.f32 %v44, %v53
    %v55 = vadd.f32 %v51, %v54
    %v56 = vld [vmem:[#allocation5 + $0x3] sm:$0x1]
    %v57 = vperm.slane %v56, 0
    %v58 = vadd.f32 %v55, %v57
    %59 = vst [vmem:[#allocation7] sm:$0xff] %v58
    // Predicated region
    $region18: #{tpu_custom_call.1} parent=1 // pred_check
      _
    $region19: #{tpu_custom_call.1} parent=1 // pred_check_branch
      %61 = sbr.rel (0) target = $region21
    $region20: #{tpu_custom_call.1} parent=1 // pred_region
      %63 = vsyncadd [#allocation4], 0
      %s65 = sshll.u32 [#allocation7], 4
      %s66 = int_to_ptr.vmem [resolvable:$true] %s65
      %s67 = sshll.u32 %s2, 4
      %s68 = int_to_ptr.hbm [resolvable:$true] %s67
      %70 = dma.vmem_to_hbm [thread:$0]  %s66, 128, %s68, [#allocation4]
    $region21: #{tpu_custom_call.1} parent=1 // pred_fallthru
      _
    // Predicated region
    $region22: #{tpu_custom_call.1} parent=1 // pred_check
      _
    $region23: #{tpu_custom_call.1} parent=1 // pred_check_branch
      %72 = sbr.rel (0) target = $region25
    $region24: #{tpu_custom_call.1} parent=1 // pred_region
      %74 = dma.done [#allocation4], 128
    $region25: #{tpu_custom_call.1} parent=1 // pred_fallthru
      _
    %75 = vsyncpa [#allocation3], 1
    %76 = vsyncpa [#allocation6], 1
    %77 = vsyncpa [#allocation4], 1

</llo_original>
